<compile_context>
chip_gen: v7x
topology: tpu7x:2x2x1
jax: 0.10.0
libtpu: 0.0.40
codegen_flags: <defaults>
</compile_context>

<pallas_src>
import functools

import jax
import jax.numpy as jnp
from jax.experimental import pallas as pl
from jax.experimental.pallas import tpu as pltpu


_LANE = 128
_TINY_BYTES = 1 << 20  # below this, pallas launch overhead dominates -> pure jnp


def _vmem_capacity_bytes():
    try:
        return int(pltpu.get_tpu_info().vmem_capacity_bytes)
    except Exception:
        return 64 << 20  # conservative: v7x physical VMEM per TC


def _ema_kernel(est_ref, latest_ref, out_ref, *, alpha, one_minus_alpha):
    # Load at native dtype, blend in f32 in-vreg (free upcast; avoids v5e bf16-VALU gap),
    # store at the state dtype. Lane axis kept full / 128-multiple -> unmasked vst.
    est = est_ref[...].astype(jnp.float32)
    lat = latest_ref[...].astype(jnp.float32)
    out_ref[...] = (est * alpha + lat * one_minus_alpha).astype(out_ref.dtype)


def _pick_tiles(rows, cols, itemsizes, budget_bytes):
    """Pick (row_tile, col_tile). 3 arrays x 2 pipeline buffers must fit budget_bytes."""
    bytes_per_elem = sum(itemsizes)          # est + latest + out, per element
    sub = 32 // min(itemsizes)               # sublane multiple: 8 f32, 16 bf16, 32 int8
    per_row_bytes = 2 * cols * bytes_per_elem
    max_tr = budget_bytes // per_row_bytes
    if max_tr >= sub:
        tr = (max_tr // sub) * sub
        if tr >= rows:
            return rows, cols                # full-extent rows: always layout-legal
        return tr, cols                      # full-width, multiple-of-sub row tile
    # Very wide matrix: even `sub` rows at full width overflow the budget -> tile columns.
    tr = min(rows, sub)
    max_tc = budget_bytes // (2 * tr * bytes_per_elem)
    tc = max(_LANE, (max_tc // _LANE) * _LANE)
    tc = min(tc, cols)
    return tr, tc


def fixed_matrix_estimator_forward(estimated_matrix, latest_probability_matrix, alpha,
                                   *, force_pallas=False, vmem_budget_override=None):
    """EMA blend of two (rows, cols) matrices.

    Returns (return_matrix, new_estimated_matrix); the new state equals the output,
    mirroring `self.estimated_matrix.data = return_matrix.detach()`.

    For in-place HBM reuse, jit the caller with donate_argnums on estimated_matrix;
    the output is already aliased to input 0 inside the pallas_call.
    """
    rows, cols = estimated_matrix.shape
    assert latest_probability_matrix.shape == (rows, cols)
    alpha = float(alpha)  # fixed ctor arg in the PyTorch module -> compile-time constant
    out_dtype = estimated_matrix.dtype
    itemsizes = (jnp.dtype(estimated_matrix.dtype).itemsize,
                 jnp.dtype(latest_probability_matrix.dtype).itemsize,
                 jnp.dtype(out_dtype).itemsize)
    total_bytes = rows * cols * sum(itemsizes)

    # Tiny inputs: let XLA fuse the blend into surrounding ops (strictly faster).
    if total_bytes < _TINY_BYTES and not force_pallas:
        out = (estimated_matrix.astype(jnp.float32) * alpha
               + latest_probability_matrix.astype(jnp.float32) * (1.0 - alpha)
               ).astype(out_dtype)
        return out, out

    # Lane-dense view for odd / narrow column counts (free reshape on contiguous data).
    work_rows, work_cols = rows, cols
    reshaped = False
    if cols % _LANE != 0 and (rows * cols) % _LANE == 0:
        work_rows, work_cols = (rows * cols) // _LANE, _LANE
        reshaped = True
        est_w = estimated_matrix.reshape(work_rows, work_cols)
        lat_w = latest_probability_matrix.reshape(work_rows, work_cols)
    else:
        est_w = estimated_matrix
        lat_w = latest_probability_matrix

    capacity = _vmem_capacity_bytes()
    budget = vmem_budget_override if vmem_budget_override is not None else capacity // 3
    tr, tc = _pick_tiles(work_rows, work_cols, itemsizes, budget)

    kernel = functools.partial(_ema_kernel, alpha=alpha, one_minus_alpha=1.0 - alpha)

    if tc == work_cols:
        grid = (pl.cdiv(work_rows, tr),)
        index_map = lambda i: (i, 0)
        dims = ("parallel",)
    else:
        grid = (pl.cdiv(work_rows, tr), pl.cdiv(work_cols, tc))
        index_map = lambda i, j: (i, j)
        dims = ("parallel", "parallel")

    # Scoped-VMEM limit sized from the budget: big enough for the chosen tiles on every
    # generation (v5e default is only 16 MiB) yet well inside v7x's 64 MiB physical VMEM.
    vmem_limit = min(capacity - (8 << 20), max(32 << 20, budget + budget // 2))

    out = pl.pallas_call(
        kernel,
        out_shape=jax.ShapeDtypeStruct((work_rows, work_cols), out_dtype),
        grid=grid,
        in_specs=[
            pl.BlockSpec((tr, tc), index_map),  # estimated_matrix
            pl.BlockSpec((tr, tc), index_map),  # latest_probability_matrix
        ],
        out_specs=pl.BlockSpec((tr, tc), index_map),
        input_output_aliases={0: 0},
        cost_estimate=pl.CostEstimate(
            flops=3 * rows * cols,
            transcendentals=0,
            bytes_accessed=total_bytes,
        ),
        compiler_params=pltpu.CompilerParams(
            dimension_semantics=dims,
            vmem_limit_bytes=vmem_limit,
        ),
    )(est_w, lat_w)

    if reshaped:
        out = out.reshape(rows, cols)
    return out, out


if __name__ == "__main__":
    initial_alpha = 0.9
    key = jax.random.PRNGKey(0)
    k1, k2, k3, k4 = jax.random.split(key, 4)

    # --- Case 1: module-default matrix (16 x 128), f32, uniform init. Force the Pallas
    #             path so the kernel itself is exercised at the module's native shape. ---
    rows, cols = 16, 128
    est = jnp.full((rows, cols), 1.0 / (rows * cols), dtype=jnp.float32)
    latest = jax.random.uniform(k1, (rows, cols), dtype=jnp.float32)
    latest = latest / jnp.sum(latest)
    out, new_state = fixed_matrix_estimator_forward(est, latest, initial_alpha,
                                                    force_pallas=True)
    out = jax.block_until_ready(out)
    ref = est * initial_alpha + latest * (1.0 - initial_alpha)
    assert jnp.allclose(out, ref, atol=1e-6), "case1: mismatch vs reference"
    assert jnp.allclose(new_state, out), "case1: state update mismatch"

    # --- Case 2: same shape through the size-gated pure-jnp fast path. ---
    out_fast, _ = fixed_matrix_estimator_forward(est, latest, initial_alpha)
    out_fast = jax.block_until_ready(out_fast)
    assert jnp.allclose(out_fast, ref, atol=1e-6), "case2: fast path mismatch"

    # --- Case 3: bf16 inputs with cols not a multiple of 128 -> in-kernel dtype handling
    #             plus the lane-dense (N//128, 128) reshape path. ---
    rows3, cols3 = 24, 96
    est3 = jnp.full((rows3, cols3), 1.0 / (rows3 * cols3), dtype=jnp.bfloat16)
    latest3 = jax.random.uniform(k2, (rows3, cols3), dtype=jnp.float32)
    latest3 = (latest3 / jnp.sum(latest3)).astype(jnp.bfloat16)
    out3, state3 = fixed_matrix_estimator_forward(est3, latest3, initial_alpha,
                                                  force_pallas=True)
    out3 = jax.block_until_ready(out3)
    ref3 = (est3.astype(jnp.float32) * initial_alpha
            + latest3.astype(jnp.float32) * (1.0 - initial_alpha)).astype(jnp.bfloat16)
    assert out3.dtype == jnp.bfloat16, "case3: wrong output dtype"
    assert jnp.allclose(out3.astype(jnp.float32), ref3.astype(jnp.float32),
                        atol=1e-2, rtol=1e-2), "case3: mismatch vs reference"
    assert jnp.allclose(state3.astype(jnp.float32), out3.astype(jnp.float32)), \
        "case3: state update mismatch"

    # --- Case 4: larger f32 matrix that passes the size gate naturally (full-extent tile). ---
    rows4, cols4 = 256, 512
    est4 = jnp.full((rows4, cols4), 1.0 / (rows4 * cols4), dtype=jnp.float32)
    latest4 = jax.random.uniform(k3, (rows4, cols4), dtype=jnp.float32)
    latest4 = latest4 / jnp.sum(latest4)
    out4, _ = fixed_matrix_estimator_forward(est4, latest4, initial_alpha)
    out4 = jax.block_until_ready(out4)
    ref4 = est4 * initial_alpha + latest4 * (1.0 - initial_alpha)
    assert jnp.allclose(out4, ref4, atol=1e-6), "case4: mismatch vs reference"

    # --- Case 5: force the column-tiling fallback (2-D grid) with a tiny VMEM budget. ---
    rows5, cols5 = 32, 512
    est5 = jnp.full((rows5, cols5), 1.0 / (rows5 * cols5), dtype=jnp.float32)
    latest5 = jax.random.uniform(k4, (rows5, cols5), dtype=jnp.float32)
    latest5 = latest5 / jnp.sum(latest5)
    out5, _ = fixed_matrix_estimator_forward(est5, latest5, initial_alpha,
                                             force_pallas=True,
                                             vmem_budget_override=64 << 10)  # grid (4, 2)
    out5 = jax.block_until_ready(out5)
    ref5 = est5 * initial_alpha + latest5 * (1.0 - initial_alpha)
    assert jnp.allclose(out5, ref5, atol=1e-6), "case5: column-tiled path mismatch"

    print("KERNEL_OK")
</pallas_src>

<mosaic_0001>
module attributes {stable_mosaic.version = 11 : i64} {
  func.func @_ema_kernel(%arg0: i32, %arg1: memref<16x128xf32, #tpu.memory_space<vmem>>, %arg2: memref<16x128xf32, #tpu.memory_space<vmem>>, %arg3: memref<16x128xf32, #tpu.memory_space<vmem>>) attributes {dimension_semantics = [#tpu.dimension_semantics<parallel>], iteration_bounds = array<i64: 1>, scalar_prefetch = 0 : i64, scratch_operands = 0 : i64, tpu.core_type = #tpu.core_type<tc>, window_params = [{transform_indices = @transform_0, window_bounds = array<i64: 16, 128>}, {transform_indices = @transform_1, window_bounds = array<i64: 16, 128>}, {transform_indices = @transform_2, window_bounds = array<i64: 16, 128>}]} {
    %c0 = arith.constant 0 : index
    %c0_0 = arith.constant 0 : index
    %0 = vector.load %arg1[%c0, %c0_0] : memref<16x128xf32, #tpu.memory_space<vmem>>, vector<16x128xf32>
    %c0_1 = arith.constant 0 : index
    %c0_2 = arith.constant 0 : index
    %1 = vector.load %arg2[%c0_1, %c0_2] : memref<16x128xf32, #tpu.memory_space<vmem>>, vector<16x128xf32>
    %cst = arith.constant 0.899999976 : f32
    %2 = vector.broadcast %cst : f32 to vector<16x128xf32>
    %3 = arith.mulf %0, %2 : vector<16x128xf32>
    %cst_3 = arith.constant 1.000000e-01 : f32
    %4 = vector.broadcast %cst_3 : f32 to vector<16x128xf32>
    %5 = arith.mulf %1, %4 : vector<16x128xf32>
    %6 = arith.addf %3, %5 : vector<16x128xf32>
    %c0_4 = arith.constant 0 : index
    %c0_5 = arith.constant 0 : index
    %7 = vector.load %arg3[%c0_4, %c0_5] : memref<16x128xf32, #tpu.memory_space<vmem>>, vector<16x128xf32>
    tpu.vector_store %arg3[%c0_4, %c0_5], %6 {strides = array<i32>} : memref<16x128xf32, #tpu.memory_space<vmem>>, vector<16x128xf32>,
    return
  }
  func.func @transform_0(%arg0: i32) -> (i32, i32) {
    %c0_i32 = arith.constant 0 : i32
    %c0_i32_0 = arith.constant 0 : i32
    return %arg0, %c0_i32 : i32, i32
  }
  func.func @transform_1(%arg0: i32) -> (i32, i32) {
    %c0_i32 = arith.constant 0 : i32
    %c0_i32_0 = arith.constant 0 : i32
    return %arg0, %c0_i32 : i32, i32
  }
  func.func @transform_2(%arg0: i32) -> (i32, i32) {
    %c0_i32 = arith.constant 0 : i32
    %c0_i32_0 = arith.constant 0 : i32
    return %arg0, %c0_i32 : i32, i32
  }
}

</mosaic_0001>

<llo_original>
// kernel: tpu_custom_call.1
$region0: #{tpu_custom_call.1}
  #allocation0 [shape = 'u32[]', space=smem, size = 0x4, offset = 0x4, fixed_abs, tag = 'smem constant byte address 0x4 - core index']
  #allocation1 [shape = 'u32[144,128]{1,0:T(1,128)}', space=vmem, size = 0x12000, scoped, tag = 'internal scratch']
  %s0 = inlined_call_operand.hbm [shape: f32[16,128], index: 0, kind: input, shape index: {}, may-alias: {0,2}]
  %s1 = inlined_call_operand.vmem [shape: f32[16,128], index: 1, kind: input, shape index: {}]
  %s2 = inlined_call_operand.hbm [shape: f32[16,128], index: 2, kind: output, shape index: {}, may-alias: {0,2}]
  %s3 = sld [smem:[#allocation0]]
  $region22: #{tpu_custom_call.1} parent=0
    _
  %s5 = ssub.s32 1, %s3
  %s6 = scalar_select 0, %s5, %s3
  $region1: #{tpu_custom_call.1} parent=0
    #allocation2 [shape = 'u8[8192]{0}', space=vmem, size = 0x2000, scoped, tag = 'input window, operand 0, single buffered']
    #allocation3 [shape = 's32[1]{0}', space=sflag, size = 0x4, scoped, tag = 'scoped memory for tpu_custom_call.1']
    #allocation4 [shape = 's32[1]{0}', space=sflag, size = 0x4, scoped, tag = 'scoped memory for tpu_custom_call.1']
    #allocation5 [shape = 'u8[8192]{0}', space=vmem, size = 0x2000, scoped, tag = 'output window, operand 0, single buffered']
    %7 = vsyncpa [#allocation3], 0
    %8 = vsyncpa [#allocation4], 0
    // Predicated region
    $region2: #{tpu_custom_call.1} parent=1 // pred_check
      _
    $region3: #{tpu_custom_call.1} parent=1 // pred_check_branch
      %10 = sbr.rel (0) target = $region5
    $region4: #{tpu_custom_call.1} parent=1 // pred_region
      %s12 = ssub.s32 256, 256
      %13 = vsyncadd [#allocation3], %s12
      %s14 = sshll.u32 [#allocation2], 4
      %s15 = int_to_ptr.vmem [resolvable:$true] %s14
      %20 = dma.hbm_to_vmem [thread:$0]  %s0, 256, %s15, [#allocation3], 128, 128, 8
    $region5: #{tpu_custom_call.1} parent=1 // pred_fallthru
      _
    // Predicated region
    $region6: #{tpu_custom_call.1} parent=1 // pred_check
      _
    $region7: #{tpu_custom_call.1} parent=1 // pred_check_branch
      %22 = sbr.rel (0) target = $region9
    $region8: #{tpu_custom_call.1} parent=1 // pred_region
      _
    $region9: #{tpu_custom_call.1} parent=1 // pred_fallthru
      _
    // Predicated region
    $region10: #{tpu_custom_call.1} parent=1 // pred_check
      _
    $region11: #{tpu_custom_call.1} parent=1 // pred_check_branch
      %24 = sbr.rel (0) target = $region13
    $region12: #{tpu_custom_call.1} parent=1 // pred_region
      %25 = dma.done [#allocation3], 256
    $region13: #{tpu_custom_call.1} parent=1 // pred_fallthru
      _
    %v26 = vld [vmem:[#allocation2] sm:$0xff]
    %v27 = vld [vmem:[#allocation2 + $0x8] sm:$0xff]
    %v28 = vld [vmem:[%s1] sm:$0xff]
    %v29 = vld [vmem:[%s1 + $0x8] sm:$0xff]
    %v30 = vmul.f32 %v26, 0.9
    %v31 = vmul.f32 %v27, 0.9
    %v32 = vmul.f32 %v28, 0.1
    %v33 = vmul.f32 %v29, 0.1
    %v34 = vadd.f32 %v30, %v32
    %v35 = vadd.f32 %v31, %v33
    %36 = vst [vmem:[#allocation5] sm:$0xff] %v34
    %37 = vst [vmem:[#allocation5 + $0x8] sm:$0xff] %v35
    // Predicated region
    $region14: #{tpu_custom_call.1} parent=1 // pred_check
      _
    $region15: #{tpu_custom_call.1} parent=1 // pred_check_branch
      %39 = sbr.rel (0) target = $region17
    $region16: #{tpu_custom_call.1} parent=1 // pred_region
      %s41 = ssub.s32 256, 256
      %42 = vsyncadd [#allocation4], %s41
      %s43 = sshll.u32 [#allocation5], 4
      %s44 = int_to_ptr.vmem [resolvable:$true] %s43
      %49 = dma.vmem_to_hbm [thread:$0]  %s44, 256, %s2, [#allocation4], 128, 128, 8
    $region17: #{tpu_custom_call.1} parent=1 // pred_fallthru
      _
    // Predicated region
    $region18: #{tpu_custom_call.1} parent=1 // pred_check
      _
    $region19: #{tpu_custom_call.1} parent=1 // pred_check_branch
      %51 = sbr.rel (0) target = $region21
    $region20: #{tpu_custom_call.1} parent=1 // pred_region
      %52 = dma.done [#allocation4], 256
    $region21: #{tpu_custom_call.1} parent=1 // pred_fallthru
      _
    %53 = vsyncpa [#allocation3], 1
    %54 = vsyncpa [#allocation4], 1

</llo_original>
